<compile_context>
chip_gen: v7x
topology: tpu7x:2x2x1
jax: 0.10.0
libtpu: 0.0.40
codegen_flags: <defaults>
</compile_context>

<pallas_src>
import jax
import jax.numpy as jnp
from jax.experimental import pallas as pl
from jax.experimental.pallas import tpu as pltpu


def _round_up(x: int, m: int) -> int:
    return (x + m - 1) // m * m


def _make_dist_ce_kernel(num_classes: int, tc: int):
    """Kernel over grid (batch_tiles, class_tiles); class axis is the reduction axis."""

    def kernel(logits_ref, label_ref, loss_ref, m_ref, s_ref, p_ref):
        # logits_ref : (TB, TC) native-dtype tile of the local logits
        # label_ref  : (TB, 1)  int32 (local class index, or -1 if not on this shard)
        # loss_ref   : (TB, 1)  f32 output: prob of the true class (0 if label == -1)
        # m_ref/s_ref/p_ref : (TB, 1) f32 scratch: running max / sumexp / picked logit
        ci = pl.program_id(1)

        @pl.when(ci == 0)
        def _init():
            m_ref[...] = jnp.full_like(m_ref, -jnp.inf)
            s_ref[...] = jnp.zeros_like(s_ref)
            p_ref[...] = jnp.zeros_like(p_ref)

        x = logits_ref[...].astype(jnp.float32)            # (TB, TC)
        labels = label_ref[...]                            # (TB, 1) int32

        # Global class index of every lane; mask lanes past num_classes (last-tile pad).
        col = ci * tc + jax.lax.broadcasted_iota(jnp.int32, x.shape, 1)
        x_m = jnp.where(col < num_classes, x, -jnp.inf)

        # Online softmax accumulation (single pass over the class tiles).
        m_old = m_ref[...]
        m_new = jnp.maximum(m_old, jnp.max(x_m, axis=1, keepdims=True))
        e = jnp.exp(x_m - m_new)                           # padded lanes -> exp(-inf) = 0
        alpha = jnp.exp(m_old - m_new)
        s_ref[...] = alpha * s_ref[...] + jnp.sum(e, axis=1, keepdims=True)
        m_ref[...] = m_new

        # Gather the true-class logit, fused into the same pass: exactly one (row, lane)
        # matches across all class tiles (when label != -1), so plain accumulation is exact.
        match = col == labels
        p_ref[...] = p_ref[...] + jnp.sum(
            jnp.where(match, x, 0.0), axis=1, keepdims=True)

        @pl.when(ci == pl.num_programs(1) - 1)
        def _finalize():
            valid = labels != -1
            prob = jnp.exp(p_ref[...] - m_ref[...]) / s_ref[...]
            loss_ref[...] = jnp.where(valid, prob, 0.0).astype(loss_ref.dtype)

    return kernel


def dist_cross_entropy(logits: jax.Array, label: jax.Array, *,
                       tb: int | None = None, tc: int | None = None,
                       vmem_limit_bytes: int = 32 * 1024 * 1024) -> jax.Array:
    """Forward of DistCrossEntropy. logits: (B, C) float (f32/bf16), label: (B,) or (B, 1) int."""
    B, C = logits.shape
    label = jnp.asarray(label).reshape(B, 1)
    if label.dtype != jnp.int32:
        label = label.astype(jnp.int32)

    # Batch tile: largest "nice" divisor of B (fewer grid steps, deeper DMA pipeline).
    if tb is None:
        tb = B
        for cand in (256, 128, 64, 32, 16, 8):
            if cand <= B and B % cand == 0:
                tb = cand
                break
    assert B % tb == 0, "batch must be divisible by the batch tile"

    # Class tile: lane-aligned, sized so the double-buffered logits tile stays well under
    # the scoped VMEM limit on every generation (v5e/v6e/v7x).
    itemsize = jnp.dtype(logits.dtype).itemsize
    if tc is None:
        budget = 4 * 1024 * 1024                         # bytes per (tb, tc) input buffer
        tc = max(128, (budget // (tb * itemsize)) // 128 * 128)
    if tc >= C:
        tc = C                                           # single class tile (full extent)
    else:
        assert tc % 128 == 0, "class tile must be a multiple of 128 lanes"

    grid = (B // tb, pl.cdiv(C, tc))
    kernel = _make_dist_ce_kernel(C, tc)

    per_row = pl.pallas_call(
        kernel,
        out_shape=jax.ShapeDtypeStruct((B, 1), jnp.float32),
        grid_spec=pltpu.PrefetchScalarGridSpec(
            num_scalar_prefetch=0,
            grid=grid,
            in_specs=[
                pl.BlockSpec((tb, tc), lambda i, c: (i, c)),   # logits tile (native dtype)
                pl.BlockSpec((tb, 1), lambda i, c: (i, 0)),    # labels (constant over c)
            ],
            out_specs=pl.BlockSpec((tb, 1), lambda i, c: (i, 0)),
            scratch_shapes=[
                pltpu.VMEM((tb, 1), jnp.float32),   # running row max
                pltpu.VMEM((tb, 1), jnp.float32),   # running row sum of exp
                pltpu.VMEM((tb, 1), jnp.float32),   # picked (true-class) logit
            ],
        ),
        compiler_params=pltpu.CompilerParams(
            dimension_semantics=("parallel", "arbitrary"),
            vmem_limit_bytes=vmem_limit_bytes,
        ),
        cost_estimate=pl.CostEstimate(
            flops=6 * B * C,
            transcendentals=B * C,
            bytes_accessed=B * C * itemsize + 2 * B * 4,
        ),
    )(logits, label)

    # clamp_min(1e-30).log().mean() * -1 : tiny (B, 1) scalar epilogue in plain JAX.
    return -jnp.mean(jnp.log(jnp.maximum(per_row, 1e-30)))


def _reference(logits, label):
    """Pure-JAX reference mirroring the PyTorch DistCrossEntropyFunc.forward exactly."""
    logits = logits.astype(jnp.float32)
    m = jnp.max(logits, axis=1, keepdims=True)
    e = jnp.exp(logits - m)
    probs = e / jnp.sum(e, axis=1, keepdims=True)
    idx = jnp.clip(label, 0, None).astype(jnp.int32)
    picked = jnp.take_along_axis(probs, idx, axis=1)
    loss = jnp.where(label != -1, picked, 0.0)
    return -jnp.mean(jnp.log(jnp.maximum(loss, 1e-30)))


if __name__ == "__main__":
    key = jax.random.PRNGKey(0)

    # Case 1: small partial-fc shard, single (tb, C) tile, f32 input, no wrapper cast.
    B, C = 16, 256
    k1, k2 = jax.random.split(key)
    logits = jax.random.normal(k1, (B, C), dtype=jnp.float32) * 4.0
    label = jax.random.randint(k2, (B, 1), 0, C, dtype=jnp.int32)
    # Rows whose class does not live on this shard get label == -1.
    label = label.at[3, 0].set(-1).at[11, 0].set(-1)

    out = jax.block_until_ready(dist_cross_entropy(logits, label))
    ref = jax.block_until_ready(_reference(logits, label))
    assert jnp.allclose(out, ref, rtol=1e-5, atol=1e-5), (out, ref)

    # Case 2: C-tiled online-softmax path — bf16 input, C not a multiple of 128,
    # 3 class tiles with lane masking on the last tile.
    B2, C2 = 16, 300
    k3, k4 = jax.random.split(k1)
    logits2 = (jax.random.normal(k3, (B2, C2), dtype=jnp.float32) * 4.0).astype(jnp.bfloat16)
    label2 = jax.random.randint(k4, (B2, 1), 0, C2, dtype=jnp.int32)
    label2 = label2.at[0, 0].set(-1).at[7, 0].set(-1)

    out2 = jax.block_until_ready(dist_cross_entropy(logits2, label2, tc=128))
    ref2 = jax.block_until_ready(_reference(logits2, label2))
    assert jnp.allclose(out2, ref2, rtol=1e-4, atol=1e-4), (out2, ref2)

    print("KERNEL_OK")
</pallas_src>

<mosaic_0001>
module attributes {stable_mosaic.version = 11 : i64} {
  func.func @kernel(%arg0: i32, %arg1: i32, %arg2: memref<16x256xf32, #tpu.memory_space<vmem>>, %arg3: memref<16x1xi32, #tpu.memory_space<vmem>>, %arg4: memref<16x1xf32, #tpu.memory_space<vmem>>, %arg5: memref<16x1xf32, #tpu.memory_space<vmem>>, %arg6: memref<16x1xf32, #tpu.memory_space<vmem>>, %arg7: memref<16x1xf32, #tpu.memory_space<vmem>>) attributes {dimension_semantics = [#tpu.dimension_semantics<parallel>, #tpu.dimension_semantics<arbitrary>], iteration_bounds = array<i64: 1, 1>, scalar_prefetch = 0 : i64, scratch_operands = 3 : i64, tpu.core_type = #tpu.core_type<tc>, window_params = [{transform_indices = @transform_0, window_bounds = array<i64: 16, 256>}, {transform_indices = @transform_1, window_bounds = array<i64: 16, 1>}, {transform_indices = @transform_2, window_bounds = array<i64: 16, 1>}]} {
    %c0_i32 = arith.constant 0 : i32
    %0 = arith.cmpi eq, %arg1, %c0_i32 : i32
    %1 = arith.extui %0 : i1 to i32
    %c0_i32_0 = arith.constant 0 : i32
    %2 = arith.cmpi ne, %1, %c0_i32_0 : i32
    scf.if %2 {
      %cst_23 = arith.constant 0xFF800000 : f32
      %41 = vector.broadcast %cst_23 : f32 to vector<16x1xf32>
      %c0_24 = arith.constant 0 : index
      %c0_25 = arith.constant 0 : index
      %42 = vector.load %arg5[%c0_24, %c0_25] : memref<16x1xf32, #tpu.memory_space<vmem>>, vector<16x1xf32>
      tpu.vector_store %arg5[%c0_24, %c0_25], %41 {strides = array<i32>} : memref<16x1xf32, #tpu.memory_space<vmem>>, vector<16x1xf32>,
      %cst_26 = arith.constant 0.000000e+00 : f32
      %43 = vector.broadcast %cst_26 : f32 to vector<16x1xf32>
      %c0_27 = arith.constant 0 : index
      %c0_28 = arith.constant 0 : index
      %44 = vector.load %arg6[%c0_27, %c0_28] : memref<16x1xf32, #tpu.memory_space<vmem>>, vector<16x1xf32>
      tpu.vector_store %arg6[%c0_27, %c0_28], %43 {strides = array<i32>} : memref<16x1xf32, #tpu.memory_space<vmem>>, vector<16x1xf32>,
      %cst_29 = arith.constant 0.000000e+00 : f32
      %45 = vector.broadcast %cst_29 : f32 to vector<16x1xf32>
      %c0_30 = arith.constant 0 : index
      %c0_31 = arith.constant 0 : index
      %46 = vector.load %arg7[%c0_30, %c0_31] : memref<16x1xf32, #tpu.memory_space<vmem>>, vector<16x1xf32>
      tpu.vector_store %arg7[%c0_30, %c0_31], %45 {strides = array<i32>} : memref<16x1xf32, #tpu.memory_space<vmem>>, vector<16x1xf32>,
    } else {
    }
    %c0 = arith.constant 0 : index
    %c0_1 = arith.constant 0 : index
    %3 = vector.load %arg2[%c0, %c0_1] : memref<16x256xf32, #tpu.memory_space<vmem>>, vector<16x256xf32>
    %c0_2 = arith.constant 0 : index
    %c0_3 = arith.constant 0 : index
    %4 = vector.load %arg3[%c0_2, %c0_3] : memref<16x1xi32, #tpu.memory_space<vmem>>, vector<16x1xi32>
    %c256_i32 = arith.constant 256 : i32
    %5 = arith.muli %arg1, %c256_i32 : i32
    %6 = tpu.iota {dimensions = array<i32: 1>} : vector<16x256xi32>
    %7 = vector.broadcast %5 : i32 to vector<16x256xi32>
    %8 = arith.addi %7, %6 : vector<16x256xi32>
    %c256_i32_4 = arith.constant 256 : i32
    %9 = vector.broadcast %c256_i32_4 : i32 to vector<16x256xi32>
    %10 = arith.cmpi slt, %8, %9 : vector<16x256xi32>
    %cst = arith.constant 0xFF800000 : f32
    %11 = vector.broadcast %cst : f32 to vector<16x256xf32>
    %12 = arith.select %10, %3, %11 : vector<16x256xi1>, vector<16x256xf32>
    %c0_5 = arith.constant 0 : index
    %c0_6 = arith.constant 0 : index
    %13 = vector.load %arg5[%c0_5, %c0_6] : memref<16x1xf32, #tpu.memory_space<vmem>>, vector<16x1xf32>
    %cst_7 = arith.constant dense<0xFF800000> : vector<16xf32>
    %14 = vector.multi_reduction <maximumf>, %12, %cst_7 [1] : vector<16x256xf32> to vector<16xf32>
    %15 = vector.shape_cast %14 : vector<16xf32> to vector<16x1xf32>
    %16 = arith.maximumf %13, %15 : vector<16x1xf32>
    %17 = vector.broadcast %16 : vector<16x1xf32> to vector<16x256xf32>
    %18 = arith.subf %12, %17 : vector<16x256xf32>
    %19 = math.exp %18 : vector<16x256xf32>
    %20 = arith.subf %13, %16 : vector<16x1xf32>
    %21 = math.exp %20 : vector<16x1xf32>
    %c0_8 = arith.constant 0 : index
    %c0_9 = arith.constant 0 : index
    %22 = vector.load %arg6[%c0_8, %c0_9] : memref<16x1xf32, #tpu.memory_space<vmem>>, vector<16x1xf32>
    %23 = arith.mulf %21, %22 : vector<16x1xf32>
    %cst_10 = arith.constant dense<0.000000e+00> : vector<16xf32>
    %24 = vector.multi_reduction <add>, %19, %cst_10 [1] : vector<16x256xf32> to vector<16xf32>
    %25 = vector.shape_cast %24 : vector<16xf32> to vector<16x1xf32>
    %26 = arith.addf %23, %25 : vector<16x1xf32>
    %c0_11 = arith.constant 0 : index
    %c0_12 = arith.constant 0 : index
    %27 = vector.load %arg6[%c0_11, %c0_12] : memref<16x1xf32, #tpu.memory_space<vmem>>, vector<16x1xf32>
    tpu.vector_store %arg6[%c0_11, %c0_12], %26 {strides = array<i32>} : memref<16x1xf32, #tpu.memory_space<vmem>>, vector<16x1xf32>,
    %c0_13 = arith.constant 0 : index
    %c0_14 = arith.constant 0 : index
    %28 = vector.load %arg5[%c0_13, %c0_14] : memref<16x1xf32, #tpu.memory_space<vmem>>, vector<16x1xf32>
    tpu.vector_store %arg5[%c0_13, %c0_14], %16 {strides = array<i32>} : memref<16x1xf32, #tpu.memory_space<vmem>>, vector<16x1xf32>,
    %29 = vector.broadcast %4 : vector<16x1xi32> to vector<16x256xi32>
    %30 = arith.cmpi eq, %8, %29 : vector<16x256xi32>
    %c0_15 = arith.constant 0 : index
    %c0_16 = arith.constant 0 : index
    %31 = vector.load %arg7[%c0_15, %c0_16] : memref<16x1xf32, #tpu.memory_space<vmem>>, vector<16x1xf32>
    %cst_17 = arith.constant 0.000000e+00 : f32
    %32 = vector.broadcast %cst_17 : f32 to vector<16x256xf32>
    %33 = arith.select %30, %3, %32 : vector<16x256xi1>, vector<16x256xf32>
    %cst_18 = arith.constant dense<0.000000e+00> : vector<16xf32>
    %34 = vector.multi_reduction <add>, %33, %cst_18 [1] : vector<16x256xf32> to vector<16xf32>
    %35 = vector.shape_cast %34 : vector<16xf32> to vector<16x1xf32>
    %36 = arith.addf %31, %35 : vector<16x1xf32>
    %c0_19 = arith.constant 0 : index
    %c0_20 = arith.constant 0 : index
    %37 = vector.load %arg7[%c0_19, %c0_20] : memref<16x1xf32, #tpu.memory_space<vmem>>, vector<16x1xf32>
    tpu.vector_store %arg7[%c0_19, %c0_20], %36 {strides = array<i32>} : memref<16x1xf32, #tpu.memory_space<vmem>>, vector<16x1xf32>,
    %c0_i32_21 = arith.constant 0 : i32
    %38 = arith.cmpi eq, %arg1, %c0_i32_21 : i32
    %39 = arith.extui %38 : i1 to i32
    %c0_i32_22 = arith.constant 0 : i32
    %40 = arith.cmpi ne, %39, %c0_i32_22 : i32
    scf.if %40 {
      %c-1_i32 = arith.constant -1 : i32
      %41 = vector.broadcast %c-1_i32 : i32 to vector<16x1xi32>
      %42 = arith.cmpi ne, %4, %41 : vector<16x1xi32>
      %c0_23 = arith.constant 0 : index
      %c0_24 = arith.constant 0 : index
      %43 = vector.load %arg7[%c0_23, %c0_24] : memref<16x1xf32, #tpu.memory_space<vmem>>, vector<16x1xf32>
      %c0_25 = arith.constant 0 : index
      %c0_26 = arith.constant 0 : index
      %44 = vector.load %arg5[%c0_25, %c0_26] : memref<16x1xf32, #tpu.memory_space<vmem>>, vector<16x1xf32>
      %45 = arith.subf %43, %44 : vector<16x1xf32>
      %46 = math.exp %45 : vector<16x1xf32>
      %c0_27 = arith.constant 0 : index
      %c0_28 = arith.constant 0 : index
      %47 = vector.load %arg6[%c0_27, %c0_28] : memref<16x1xf32, #tpu.memory_space<vmem>>, vector<16x1xf32>
      %48 = arith.divf %46, %47 : vector<16x1xf32>
      %cst_29 = arith.constant 0.000000e+00 : f32
      %49 = vector.broadcast %cst_29 : f32 to vector<16x1xf32>
      %50 = arith.select %42, %48, %49 : vector<16x1xi1>, vector<16x1xf32>
      %c0_30 = arith.constant 0 : index
      %c0_31 = arith.constant 0 : index
      %51 = vector.load %arg4[%c0_30, %c0_31] : memref<16x1xf32, #tpu.memory_space<vmem>>, vector<16x1xf32>
      tpu.vector_store %arg4[%c0_30, %c0_31], %50 {strides = array<i32>} : memref<16x1xf32, #tpu.memory_space<vmem>>, vector<16x1xf32>,
    } else {
    }
    return
  }
  func.func @transform_0(%arg0: i32, %arg1: i32) -> (i32, i32) {
    %c0_i32 = arith.constant 0 : i32
    return %arg0, %arg1 : i32, i32
  }
  func.func @transform_1(%arg0: i32, %arg1: i32) -> (i32, i32) {
    %c0_i32 = arith.constant 0 : i32
    %c0_i32_0 = arith.constant 0 : i32
    return %arg0, %c0_i32 : i32, i32
  }
  func.func @transform_2(%arg0: i32, %arg1: i32) -> (i32, i32) {
    %c0_i32 = arith.constant 0 : i32
    %c0_i32_0 = arith.constant 0 : i32
    return %arg0, %c0_i32 : i32, i32
  }
}

</mosaic_0001>

<llo_original>
// kernel: tpu_custom_call.1
$region0: #{tpu_custom_call.1}
  #allocation0 [shape = 'u32[]', space=smem, size = 0x4, offset = 0x4, fixed_abs, tag = 'smem constant byte address 0x4 - core index']
  #allocation1 [shape = 'u32[144,128]{1,0:T(1,128)}', space=vmem, size = 0x12000, scoped, tag = 'internal scratch']
  #allocation2 [shape = 'f32[16,1]{1,0:T(8,128)}', space=vmem, size = 0x2000, scoped, tag = 'scratch operand']
  #allocation3 [shape = 'f32[16,1]{1,0:T(8,128)}', space=vmem, size = 0x2000, scoped, tag = 'scratch operand']
  #allocation4 [shape = 'f32[16,1]{1,0:T(8,128)}', space=vmem, size = 0x2000, scoped, tag = 'scratch operand']
  %s0 = inlined_call_operand.hbm [shape: f32[16,256], index: 0, kind: input, shape index: {}]
  %s1 = inlined_call_operand.vmem [shape: s32[16,1], index: 1, kind: input, shape index: {}]
  %s2 = inlined_call_operand.vmem [shape: f32[16,1], index: 2, kind: output, shape index: {}]
  %s3 = sld [smem:[#allocation0]]
  $region30: #{tpu_custom_call.1} parent=0
    _
  %s5 = ssub.s32 1, %s3
  %s6 = scalar_select 0, %s5, %s3
  $region1: #{tpu_custom_call.1} parent=0
    #allocation5 [shape = 'u8[16384]{0}', space=vmem, size = 0x4000, scoped, tag = 'input window, operand 0, single buffered']
    #allocation6 [shape = 's32[1]{0}', space=sflag, size = 0x4, scoped, tag = 'scoped memory for tpu_custom_call.1']
    %7 = vsyncpa [#allocation6], 0
    // Predicated region
    $region2: #{tpu_custom_call.1} parent=1 // pred_check
      _
    $region3: #{tpu_custom_call.1} parent=1 // pred_check_branch
      %9 = sbr.rel (0) target = $region5
    $region4: #{tpu_custom_call.1} parent=1 // pred_region
      %s11 = ssub.s32 512, 512
      %12 = vsyncadd [#allocation6], %s11
      %s13 = sshll.u32 [#allocation5], 4
      %s14 = int_to_ptr.vmem [resolvable:$true] %s13
      %19 = dma.hbm_to_vmem [thread:$0]  %s0, 512, %s14, [#allocation6], 256, 256, 16
    $region5: #{tpu_custom_call.1} parent=1 // pred_fallthru
      _
    // Predicated region
    $region6: #{tpu_custom_call.1} parent=1 // pred_check
      _
    $region7: #{tpu_custom_call.1} parent=1 // pred_check_branch
      %21 = sbr.rel (0) target = $region9
    $region8: #{tpu_custom_call.1} parent=1 // pred_region
      _
    $region9: #{tpu_custom_call.1} parent=1 // pred_fallthru
      _
    // Predicated region
    $region10: #{tpu_custom_call.1} parent=1 // pred_check
      _
    $region11: #{tpu_custom_call.1} parent=1 // pred_check_branch
      %23 = sbr.rel (0) target = $region13
    $region12: #{tpu_custom_call.1} parent=1 // pred_region
      %24 = dma.done [#allocation6], 512
    $region13: #{tpu_custom_call.1} parent=1 // pred_fallthru
      _
    %p25 = scmp.eq.s32.totalorder 0, 0
    // Predicated region
    $region14: #{tpu_custom_call.1} parent=1 // pred_check
      %p26 = pneg %p25
    $region15: #{tpu_custom_call.1} parent=1 // pred_check_branch
      %28 = sbr.rel (%p26) target = $region17
    $region16: #{tpu_custom_call.1} parent=1 // pred_region
      %vm29 = vcmask 7168
      %30 = vst.msk [vmem:[#allocation2] sm:$0xff] %vm29, -inf
      %31 = vst.msk [vmem:[#allocation2 + $0x8] sm:$0xff] %vm29, -inf
      %32 = vst.msk [vmem:[#allocation3] sm:$0xff] %vm29, 0.0
      %33 = vst.msk [vmem:[#allocation3 + $0x8] sm:$0xff] %vm29, 0.0
      %34 = vst.msk [vmem:[#allocation4] sm:$0xff] %vm29, 0.0
      %35 = vst.msk [vmem:[#allocation4 + $0x8] sm:$0xff] %vm29, 0.0
    $region17: #{tpu_custom_call.1} parent=1 // pred_fallthru
      _
    %v36 = vld [vmem:[#allocation5] sm:$0xff]
    %v37 = vld [vmem:[#allocation5 + $0x8] sm:$0xff]
    %v38 = vld [vmem:[#allocation5 + $0x10] sm:$0xff]
    %v39 = vld [vmem:[#allocation5 + $0x18] sm:$0xff]
    %v40 = vld [vmem:[%s1] sm:$0xff]
    %v41 = vld [vmem:[%s1 + $0x8] sm:$0xff]
    %s42 = smul.u32 0, 256
    %v43 = vlaneseq
    %v44 = vand.u32 %v43, 127
    %v45 = vadd.s32 %v44, 128
    %v46 = vstv %s42
    %v47 = vadd.s32 %v46, %v44
    %v48 = vadd.s32 %v46, %v45
    %vm49 = vcmp.lt.s32.totalorder %v47, 256
    %vm50 = vcmp.lt.s32.totalorder %v48, 256
    %v51 = vsel %vm49, %v36, -inf
    %v52 = vsel %vm50, %v37, -inf
    %v53 = vsel %vm49, %v38, -inf
    %v54 = vsel %vm50, %v39, -inf
    %v55 = vld [vmem:[#allocation2] sm:$0xff]
    %v56 = vld [vmem:[#allocation2 + $0x8] sm:$0xff]
    %v57 = vmax.f32 %v51, %v52
    %58 = vmax.xlane.f32.xlu0 %v57
    %v59 = vpop.xlane.xlu0 %58
    %v60 = vmax.f32 %v53, %v54
    %61 = vmax.xlane.f32.xlu0 %v60
    %v62 = vpop.xlane.xlu0 %61
    %v63 = vmax.f32 %v55, %v59
    %v64 = vmax.f32 %v56, %v62
    %66 = vset.pattern.permute.xlu0 0
    %67 = vperm.xlu0 %66, %v63
    %v68 = vpop.permute.xlu0 %67
    %71 = vset.pattern.permute.xlu0 0
    %72 = vperm.xlu0 %71, %v64
    %v73 = vpop.permute.xlu0 %72
    %v75 = vsub.f32 %v51, %v68
    %v76 = vsub.f32 %v52, %v68
    %v77 = vsub.f32 %v53, %v73
    %v78 = vsub.f32 %v54, %v73
    %v79 = vmul.f32 %v75, 1.442695
    %v80 = vpow.pop %v79
    %v81 = vmul.f32 %v76, 1.442695
    %v82 = vpow.pop %v81
    %v83 = vmul.f32 %v77, 1.442695
    %v84 = vpow.pop %v83
    %v85 = vmul.f32 %v78, 1.442695
    %v86 = vpow.pop %v85
    %v87 = vsub.f32 %v55, %v63
    %v88 = vsub.f32 %v56, %v64
    %v89 = vmul.f32 %v87, 1.442695
    %v90 = vpow.pop %v89
    %v91 = vmul.f32 %v88, 1.442695
    %v92 = vpow.pop %v91
    %v93 = vld [vmem:[#allocation3] sm:$0xff]
    %v94 = vld [vmem:[#allocation3 + $0x8] sm:$0xff]
    %v95 = vmul.f32 %v90, %v93
    %v96 = vmul.f32 %v92, %v94
    %v97 = vadd.f32 %v80, %v82
    %98 = vadd.xlane.f32.xlu0 %v97
    %v99 = vpop.xlane.xlu0 %98
    %v100 = vadd.f32 %v84, %v86
    %101 = vadd.xlane.f32.xlu0 %v100
    %v102 = vpop.xlane.xlu0 %101
    %v103 = vadd.f32 %v95, %v99
    %v104 = vadd.f32 %v96, %v102
    %vm105 = vcmask 7168
    %106 = vst.msk [vmem:[#allocation3] sm:$0xff] %vm105, %v103
    %107 = vst.msk [vmem:[#allocation3 + $0x8] sm:$0xff] %vm105, %v104
    %108 = vst.msk [vmem:[#allocation2] sm:$0xff] %vm105, %v63
    %109 = vst.msk [vmem:[#allocation2 + $0x8] sm:$0xff] %vm105, %v64
    %110 = vset.pattern.permute.xlu0 0
    %111 = vperm.xlu0 %110, %v40
    %v112 = vpop.permute.xlu0 %111
    %113 = vset.pattern.permute.xlu0 0
    %114 = vperm.xlu0 %113, %v41
    %v115 = vpop.permute.xlu0 %114
    %vm116 = vcmp.eq.s32.totalorder %v47, %v112
    %vm117 = vcmp.eq.s32.totalorder %v48, %v112
    %vm118 = vcmp.eq.s32.totalorder %v47, %v115
    %vm119 = vcmp.eq.s32.totalorder %v48, %v115
    %v120 = vld [vmem:[#allocation4] sm:$0xff]
    %v121 = vld [vmem:[#allocation4 + $0x8] sm:$0xff]
    %v122 = vsel %vm116, %v36, 0.0
    %v123 = vsel %vm117, %v37, 0.0
    %v124 = vsel %vm118, %v38, 0.0
    %v125 = vsel %vm119, %v39, 0.0
    %v126 = vadd.f32 %v122, %v123
    %127 = vadd.xlane.f32.xlu0 %v126
    %v128 = vpop.xlane.xlu0 %127
    %v129 = vadd.f32 %v124, %v125
    %130 = vadd.xlane.f32.xlu0 %v129
    %v131 = vpop.xlane.xlu0 %130
    %v132 = vadd.f32 %v120, %v128
    %v133 = vadd.f32 %v121, %v131
    %134 = vst.msk [vmem:[#allocation4] sm:$0xff] %vm105, %v132
    %135 = vst.msk [vmem:[#allocation4 + $0x8] sm:$0xff] %vm105, %v133
    // Predicated region
    $region18: #{tpu_custom_call.1} parent=1 // pred_check
      %p136 = pneg %p25
    $region19: #{tpu_custom_call.1} parent=1 // pred_check_branch
      %138 = sbr.rel (%p136) target = $region21
    $region20: #{tpu_custom_call.1} parent=1 // pred_region
      %vm139 = vcmp.ne.s32.totalorder %v40, 4294967295
      %vm140 = vcmp.ne.s32.totalorder %v41, 4294967295
      %v141 = vld [vmem:[#allocation4] sm:$0xff]
      %v142 = vld [vmem:[#allocation4 + $0x8] sm:$0xff]
      %v143 = vld [vmem:[#allocation2] sm:$0xff]
      %v144 = vld [vmem:[#allocation2 + $0x8] sm:$0xff]
      %v145 = vsub.f32 %v141, %v143
      %v146 = vsub.f32 %v142, %v144
      %v147 = vmul.f32 %v145, 1.442695
      %v148 = vpow.pop %v147
      %v149 = vmul.f32 %v146, 1.442695
      %v150 = vpow.pop %v149
      %v151 = vld [vmem:[#allocation3] sm:$0xff]
      %v152 = vld [vmem:[#allocation3 + $0x8] sm:$0xff]
      %v153 = vrcp.pop %v151
      %v154 = vmul.f32 %v148, %v153
      %v155 = vrcp.pop %v152
      %v156 = vmul.f32 %v150, %v155
      %v157 = vsel %vm139, %v154, 0.0
      %v158 = vsel %vm140, %v156, 0.0
      %159 = vst.msk [vmem:[%s2] sm:$0xff] %vm105, %v157
      %160 = vst.msk [vmem:[%s2 + $0x8] sm:$0xff] %vm105, %v158
    $region21: #{tpu_custom_call.1} parent=1 // pred_fallthru
      _
    // Predicated region
    $region22: #{tpu_custom_call.1} parent=1 // pred_check
      _
    $region23: #{tpu_custom_call.1} parent=1 // pred_check_branch
      %162 = sbr.rel (0) target = $region25
    $region24: #{tpu_custom_call.1} parent=1 // pred_region
      _
    $region25: #{tpu_custom_call.1} parent=1 // pred_fallthru
      _
    // Predicated region
    $region26: #{tpu_custom_call.1} parent=1 // pred_check
      _
    $region27: #{tpu_custom_call.1} parent=1 // pred_check_branch
      %164 = sbr.rel (0) target = $region29
    $region28: #{tpu_custom_call.1} parent=1 // pred_region
      _
    $region29: #{tpu_custom_call.1} parent=1 // pred_fallthru
      _
    %165 = vsyncpa [#allocation6], 1

</llo_original>
